<compile_context>
chip_gen: v7x
topology: tpu7x:2x2x1
jax: 0.10.0
libtpu: 0.0.40
codegen_flags: <defaults>
</compile_context>

<pallas_src>
import jax
import jax.numpy as jnp
import numpy as np
from jax.experimental import pallas as pl
from jax.experimental.pallas import tpu as pltpu

HIDDEN_DIM = 64      # module default hidden_dim=64
LN_EPS = 1e-5        # PyTorch nn.LayerNorm default eps
MAX_TILE = 1024      # lane tile over the batch (multiple of 128); sweep knob


def _erf(x):
    # Abramowitz & Stegun 7.1.26 rational approximation (max abs err ~1.5e-7),
    # reproducing torch's exact erf-based nn.GELU().
    a1, a2, a3, a4, a5 = (0.254829592, -0.284496736, 1.421413741,
                          -1.453152027, 1.061405429)
    p = 0.3275911
    ax = jnp.abs(x)
    d = 1.0 + p * ax
    # EUP approximate reciprocal + one Newton step (cheaper than a full-precision
    # divide; keeps ~f32 accuracy so the 1e-5 parity check still passes).
    t = pl.reciprocal(d, approx=True)
    t = t * (2.0 - d * t)
    poly = ((((a5 * t + a4) * t + a3) * t + a2) * t + a1) * t
    y = 1.0 - poly * jnp.exp(-ax * ax)
    # Sign transfer via the sign bit: 2 bitwise VALU ops, no compare/select and no
    # extra vreg for -y.
    sign = pltpu.bitcast(x, jnp.uint32) & jnp.uint32(0x80000000)
    return pltpu.bitcast(pltpu.bitcast(y, jnp.uint32) ^ sign, jnp.float32)


def unity_kernel(x_ref, w1t_ref, b1_ref, g_ref, beta_ref, w2_ref, b2_ref, o_ref):
    # Batch-on-lanes layout:
    #   x_ref:   (2, TB)   two input features on sublanes, batch on lanes
    #   w1t_ref: (H, 2)    Linear(2, H) weight, transposed
    #   b1/g/beta/w2: (H, 1) columns;  b2_ref: SMEM (1, 1) scalar
    #   o_ref:   (1, TB)   lane-dense output row
    x = x_ref[...].astype(jnp.float32)      # (2, TB)
    w1t = w1t_ref[...].astype(jnp.float32)  # (H, 2)

    # --- Linear(2, H): K=2 contraction as two VPU broadcast-FMAs (no MXU) ---
    h = (w1t[:, 0:1] * x[0:1, :]
         + w1t[:, 1:2] * x[1:2, :]
         + b1_ref[...])                     # (H, TB)

    # --- LayerNorm over H (sublane reductions -> XLU), biased variance ---
    mu = jnp.mean(h, axis=0, keepdims=True)             # (1, TB)
    dev = h - mu
    var = jnp.mean(dev * dev, axis=0, keepdims=True)    # (1, TB)
    hn = dev * jax.lax.rsqrt(var + LN_EPS)
    hn = hn * g_ref[...] + beta_ref[...]                 # affine

    # --- GELU (exact, erf-based, like torch nn.GELU() default) ---
    ge = 0.5 * hn * (1.0 + _erf(hn * 0.7071067811865476))

    # --- Linear(H, 1): elementwise multiply + sublane reduce (no MXU) ---
    y = jnp.sum(ge * w2_ref[...], axis=0, keepdims=True) + b2_ref[0, 0]   # (1, TB)

    # --- Sigmoid, lane-dense store ---
    o_ref[...] = jax.nn.sigmoid(y).astype(o_ref.dtype)


def _round_up(n, m):
    return -(-n // m) * m


def _num_tensorcores():
    """Best-effort TensorCores-per-chip (v7x megacore = 2, v5e/v6e = 1)."""
    try:
        info = pltpu.get_tpu_info()
        for attr in ("num_cores", "num_tensorcores", "tensorcore_count",
                     "cores_per_chip", "core_count"):
            v = getattr(info, attr, None)
            if v:
                return max(1, int(v))
    except Exception:
        pass
    try:
        kind = jax.devices()[0].device_kind.lower()
        if ("v4" in kind) or ("v7" in kind) or ("7x" in kind):
            return 2
    except Exception:
        pass
    return 1


def _choose_tile(B, num_cores, max_tile):
    """Lane tile over the batch (multiple of 128)."""
    b128 = _round_up(max(int(B), 1), 128)
    if num_cores <= 1 or b128 <= 128:
        # Single TensorCore (or batch too small to split): fewest grid steps,
        # amortizing the ~0.35us per-step pipeline overhead.
        return int(min(max_tile, b128))
    # Multi-core: smallest k such that cores*k equal lane tiles fit under max_tile,
    # so the grid length is a multiple of num_cores (no core idles on the last wave).
    k = 1
    while True:
        tile = _round_up(pl.cdiv(int(B), num_cores * k), 128)
        if tile <= max_tile:
            return int(tile)
        k += 1


def unity_forward(x, params, *, max_tile=MAX_TILE):
    """Forward pass of UnityNetwork. x: (B, 2) -> (B, 1)."""
    w1, b1, gamma, beta, w2, b2 = params
    B = x.shape[0]
    H = w1.shape[1]

    tile = _choose_tile(B, _num_tensorcores(), max_tile)
    grid_b = pl.cdiv(B, tile)

    # Batch-on-lanes layout, no explicit zero-pad: Pallas masks the ragged last block.
    xt = x.astype(jnp.float32).T                    # (2, B)

    # Column-shaped params for the (H sublanes, batch lanes) layout.
    w1t = w1.T.astype(jnp.float32)                  # (H, 2)
    b1c = b1.reshape(H, 1).astype(jnp.float32)
    gc = gamma.reshape(H, 1).astype(jnp.float32)
    betac = beta.reshape(H, 1).astype(jnp.float32)
    w2c = w2.reshape(H, 1).astype(jnp.float32)
    b2c = b2.reshape(1, 1).astype(jnp.float32)

    # Advisory cost: ~40 VALU flops and ~2 transcendentals per (H, B) element.
    cost = pl.CostEstimate(
        flops=int(B) * H * 40,
        transcendentals=int(B) * (2 * H + 2),
        bytes_accessed=int(B) * 3 * 4 + (H * 6 + 1) * 4,
    )

    out = pl.pallas_call(
        unity_kernel,
        out_shape=jax.ShapeDtypeStruct((1, B), jnp.float32),
        grid=(grid_b,),
        in_specs=[
            pl.BlockSpec((2, tile), lambda i: (0, i)),   # x (batch on lanes)
            pl.BlockSpec((H, 2), lambda i: (0, 0)),      # W1^T
            pl.BlockSpec((H, 1), lambda i: (0, 0)),      # b1
            pl.BlockSpec((H, 1), lambda i: (0, 0)),      # LN gamma
            pl.BlockSpec((H, 1), lambda i: (0, 0)),      # LN beta
            pl.BlockSpec((H, 1), lambda i: (0, 0)),      # W2
            pl.BlockSpec(memory_space=pltpu.MemorySpace.SMEM),  # b2 scalar in SMEM
        ],
        out_specs=pl.BlockSpec((1, tile), lambda i: (0, i)),
        compiler_params=pltpu.CompilerParams(
            dimension_semantics=("parallel",)),
        cost_estimate=cost,
    )(xt, w1t, b1c, gc, betac, w2c, b2c)

    return out[0, :].reshape(B, 1).astype(x.dtype)


def init_params(key, hidden_dim=HIDDEN_DIM):
    k1, k2, k3, k4 = jax.random.split(key, 4)
    # Deterministic synthetic init (shapes follow the nn.Module __init__).
    w1 = jax.random.normal(k1, (2, hidden_dim), jnp.float32) * 0.5
    b1 = jax.random.normal(k2, (1, hidden_dim), jnp.float32) * 0.1
    gamma = jnp.ones((1, hidden_dim), jnp.float32)   # LayerNorm default weight
    beta = jnp.zeros((1, hidden_dim), jnp.float32)   # LayerNorm default bias
    w2 = jax.random.normal(k3, (hidden_dim, 1), jnp.float32) * 0.2
    b2 = jax.random.normal(k4, (1, 1), jnp.float32) * 0.1
    return (w1, b1, gamma, beta, w2, b2)


def unity_reference(x, params):
    # Pure-JAX reference (exact erf-based GELU).
    w1, b1, gamma, beta, w2, b2 = params
    h = x @ w1 + b1
    mu = jnp.mean(h, axis=-1, keepdims=True)
    var = jnp.mean((h - mu) ** 2, axis=-1, keepdims=True)
    hn = (h - mu) / jnp.sqrt(var + LN_EPS)
    hn = hn * gamma + beta
    ge = 0.5 * hn * (1.0 + jax.scipy.special.erf(hn / jnp.sqrt(2.0)))
    return jax.nn.sigmoid(ge @ w2 + b2)


if __name__ == "__main__":
    key = jax.random.PRNGKey(0)
    kx, kp = jax.random.split(key)
    params = init_params(kp)

    # Small shape implied by the module: x is (batch, 2).
    x_small = jax.random.normal(kx, (8, 2), jnp.float32)
    out_small = jax.block_until_ready(unity_forward(x_small, params))
    np.testing.assert_allclose(np.asarray(out_small),
                               np.asarray(unity_reference(x_small, params)),
                               atol=1e-5, rtol=1e-5)

    # Multi-tile path: exercises the ragged-block masking and grid pipelining.
    x_big = jax.random.normal(kx, (2048, 2), jnp.float32)
    out_big = jax.block_until_ready(unity_forward(x_big, params))
    np.testing.assert_allclose(np.asarray(out_big),
                               np.asarray(unity_reference(x_big, params)),
                               atol=1e-5, rtol=1e-5)

    print("KERNEL_OK")
</pallas_src>

<mosaic_0001>
module attributes {stable_mosaic.version = 11 : i64} {
  func.func @unity_kernel(%arg0: i32, %arg1: memref<2x128xf32, #tpu.memory_space<vmem>>, %arg2: memref<64x2xf32, #tpu.memory_space<vmem>>, %arg3: memref<64x1xf32, #tpu.memory_space<vmem>>, %arg4: memref<64x1xf32, #tpu.memory_space<vmem>>, %arg5: memref<64x1xf32, #tpu.memory_space<vmem>>, %arg6: memref<64x1xf32, #tpu.memory_space<vmem>>, %arg7: memref<1x1xf32, #tpu.memory_space<smem>>, %arg8: memref<1x128xf32, #tpu.memory_space<vmem>>) attributes {dimension_semantics = [#tpu.dimension_semantics<parallel>], iteration_bounds = array<i64: 1>, scalar_prefetch = 0 : i64, scratch_operands = 0 : i64, tpu.core_type = #tpu.core_type<tc>, window_params = [{transform_indices = @transform_0, window_bounds = array<i64: 2, 128>}, {pipeline_mode = #tpu.pipeline_mode<synchronous>, transform_indices = @transform_1, window_bounds = array<i64: 64, 2>}, {pipeline_mode = #tpu.pipeline_mode<synchronous>, transform_indices = @transform_2, window_bounds = array<i64: 64, 1>}, {pipeline_mode = #tpu.pipeline_mode<synchronous>, transform_indices = @transform_3, window_bounds = array<i64: 64, 1>}, {pipeline_mode = #tpu.pipeline_mode<synchronous>, transform_indices = @transform_4, window_bounds = array<i64: 64, 1>}, {pipeline_mode = #tpu.pipeline_mode<synchronous>, transform_indices = @transform_5, window_bounds = array<i64: 64, 1>}, {transform_indices = @transform_6, window_bounds = array<i64: 1, 1>}, {transform_indices = @transform_7, window_bounds = array<i64: 1, 128>}]} {
    %c0 = arith.constant 0 : index
    %c0_0 = arith.constant 0 : index
    %0 = vector.load %arg1[%c0, %c0_0] : memref<2x128xf32, #tpu.memory_space<vmem>>, vector<2x128xf32>
    %c0_1 = arith.constant 0 : index
    %c0_2 = arith.constant 0 : index
    %1 = vector.load %arg2[%c0_1, %c0_2] : memref<64x2xf32, #tpu.memory_space<vmem>>, vector<64x2xf32>
    %2 = vector.extract_strided_slice %1 {offsets = [0, 0], sizes = [64, 1], strides = [1, 1]} : vector<64x2xf32> to vector<64x1xf32>
    %3 = vector.extract_strided_slice %0 {offsets = [0, 0], sizes = [1, 128], strides = [1, 1]} : vector<2x128xf32> to vector<1x128xf32>
    %4 = vector.broadcast %2 : vector<64x1xf32> to vector<64x128xf32>
    %5 = vector.broadcast %3 : vector<1x128xf32> to vector<64x128xf32>
    %6 = arith.mulf %4, %5 : vector<64x128xf32>
    %7 = vector.extract_strided_slice %1 {offsets = [0, 1], sizes = [64, 1], strides = [1, 1]} : vector<64x2xf32> to vector<64x1xf32>
    %8 = vector.extract_strided_slice %0 {offsets = [1, 0], sizes = [1, 128], strides = [1, 1]} : vector<2x128xf32> to vector<1x128xf32>
    %9 = vector.broadcast %7 : vector<64x1xf32> to vector<64x128xf32>
    %10 = vector.broadcast %8 : vector<1x128xf32> to vector<64x128xf32>
    %11 = arith.mulf %9, %10 : vector<64x128xf32>
    %12 = arith.addf %6, %11 : vector<64x128xf32>
    %c0_3 = arith.constant 0 : index
    %c0_4 = arith.constant 0 : index
    %13 = vector.load %arg3[%c0_3, %c0_4] : memref<64x1xf32, #tpu.memory_space<vmem>>, vector<64x1xf32>
    %14 = vector.broadcast %13 : vector<64x1xf32> to vector<64x128xf32>
    %15 = arith.addf %12, %14 : vector<64x128xf32>
    %cst = arith.constant dense<0.000000e+00> : vector<128xf32>
    %16 = vector.multi_reduction <add>, %15, %cst [0] : vector<64x128xf32> to vector<128xf32>
    %17 = vector.shape_cast %16 : vector<128xf32> to vector<1x128xf32>
    %cst_5 = arith.constant 6.400000e+01 : f32
    %18 = vector.broadcast %cst_5 : f32 to vector<1x128xf32>
    %19 = arith.divf %17, %18 : vector<1x128xf32>
    %20 = vector.broadcast %19 : vector<1x128xf32> to vector<64x128xf32>
    %21 = arith.subf %15, %20 : vector<64x128xf32>
    %22 = arith.mulf %21, %21 : vector<64x128xf32>
    %cst_6 = arith.constant dense<0.000000e+00> : vector<128xf32>
    %23 = vector.multi_reduction <add>, %22, %cst_6 [0] : vector<64x128xf32> to vector<128xf32>
    %24 = vector.shape_cast %23 : vector<128xf32> to vector<1x128xf32>
    %cst_7 = arith.constant 6.400000e+01 : f32
    %25 = vector.broadcast %cst_7 : f32 to vector<1x128xf32>
    %26 = arith.divf %24, %25 : vector<1x128xf32>
    %cst_8 = arith.constant 9.99999974E-6 : f32
    %27 = vector.broadcast %cst_8 : f32 to vector<1x128xf32>
    %28 = arith.addf %26, %27 : vector<1x128xf32>
    %29 = math.rsqrt %28 : vector<1x128xf32>
    %30 = vector.broadcast %29 : vector<1x128xf32> to vector<64x128xf32>
    %31 = arith.mulf %21, %30 : vector<64x128xf32>
    %c0_9 = arith.constant 0 : index
    %c0_10 = arith.constant 0 : index
    %32 = vector.load %arg4[%c0_9, %c0_10] : memref<64x1xf32, #tpu.memory_space<vmem>>, vector<64x1xf32>
    %33 = vector.broadcast %32 : vector<64x1xf32> to vector<64x128xf32>
    %34 = arith.mulf %31, %33 : vector<64x128xf32>
    %c0_11 = arith.constant 0 : index
    %c0_12 = arith.constant 0 : index
    %35 = vector.load %arg5[%c0_11, %c0_12] : memref<64x1xf32, #tpu.memory_space<vmem>>, vector<64x1xf32>
    %36 = vector.broadcast %35 : vector<64x1xf32> to vector<64x128xf32>
    %37 = arith.addf %34, %36 : vector<64x128xf32>
    %cst_13 = arith.constant 5.000000e-01 : f32
    %38 = vector.broadcast %cst_13 : f32 to vector<64x128xf32>
    %39 = arith.mulf %38, %37 : vector<64x128xf32>
    %cst_14 = arith.constant 0.707106769 : f32
    %40 = vector.broadcast %cst_14 : f32 to vector<64x128xf32>
    %41 = arith.mulf %37, %40 : vector<64x128xf32>
    %42 = math.absf %41 : vector<64x128xf32>
    %cst_15 = arith.constant 0.327591091 : f32
    %43 = vector.broadcast %cst_15 : f32 to vector<64x128xf32>
    %44 = arith.mulf %43, %42 : vector<64x128xf32>
    %cst_16 = arith.constant 1.000000e+00 : f32
    %45 = vector.broadcast %cst_16 : f32 to vector<64x128xf32>
    %46 = arith.addf %45, %44 : vector<64x128xf32>
    %47 = tpu.reciprocal %46 {approx = true} : vector<64x128xf32> -> vector<64x128xf32>
    %48 = arith.mulf %46, %47 : vector<64x128xf32>
    %cst_17 = arith.constant 2.000000e+00 : f32
    %49 = vector.broadcast %cst_17 : f32 to vector<64x128xf32>
    %50 = arith.subf %49, %48 : vector<64x128xf32>
    %51 = arith.mulf %47, %50 : vector<64x128xf32>
    %cst_18 = arith.constant 1.06140542 : f32
    %52 = vector.broadcast %cst_18 : f32 to vector<64x128xf32>
    %53 = arith.mulf %52, %51 : vector<64x128xf32>
    %cst_19 = arith.constant -1.45315206 : f32
    %54 = vector.broadcast %cst_19 : f32 to vector<64x128xf32>
    %55 = arith.addf %53, %54 : vector<64x128xf32>
    %56 = arith.mulf %55, %51 : vector<64x128xf32>
    %cst_20 = arith.constant 1.42141378 : f32
    %57 = vector.broadcast %cst_20 : f32 to vector<64x128xf32>
    %58 = arith.addf %56, %57 : vector<64x128xf32>
    %59 = arith.mulf %58, %51 : vector<64x128xf32>
    %cst_21 = arith.constant -0.284496725 : f32
    %60 = vector.broadcast %cst_21 : f32 to vector<64x128xf32>
    %61 = arith.addf %59, %60 : vector<64x128xf32>
    %62 = arith.mulf %61, %51 : vector<64x128xf32>
    %cst_22 = arith.constant 0.254829586 : f32
    %63 = vector.broadcast %cst_22 : f32 to vector<64x128xf32>
    %64 = arith.addf %62, %63 : vector<64x128xf32>
    %65 = arith.mulf %64, %51 : vector<64x128xf32>
    %cst_23 = arith.constant 0.000000e+00 : f32
    %66 = vector.broadcast %cst_23 : f32 to vector<64x128xf32>
    %67 = arith.subf %66, %42 : vector<64x128xf32>
    %68 = arith.mulf %67, %42 : vector<64x128xf32>
    %69 = math.exp %68 : vector<64x128xf32>
    %70 = arith.mulf %65, %69 : vector<64x128xf32>
    %cst_24 = arith.constant 1.000000e+00 : f32
    %71 = vector.broadcast %cst_24 : f32 to vector<64x128xf32>
    %72 = arith.subf %71, %70 : vector<64x128xf32>
    %73 = tpu.bitcast %41 : vector<64x128xf32> -> vector<64x128xi32>
    %c-2147483648_i32 = arith.constant -2147483648 : i32
    %74 = vector.broadcast %c-2147483648_i32 : i32 to vector<64x128xi32>
    %75 = arith.andi %73, %74 : vector<64x128xi32>
    %76 = tpu.bitcast %72 : vector<64x128xf32> -> vector<64x128xi32>
    %77 = arith.xori %76, %75 : vector<64x128xi32>
    %78 = tpu.bitcast %77 : vector<64x128xi32> -> vector<64x128xf32>
    %cst_25 = arith.constant 1.000000e+00 : f32
    %79 = vector.broadcast %cst_25 : f32 to vector<64x128xf32>
    %80 = arith.addf %79, %78 : vector<64x128xf32>
    %81 = arith.mulf %39, %80 : vector<64x128xf32>
    %c0_26 = arith.constant 0 : index
    %c0_27 = arith.constant 0 : index
    %82 = vector.load %arg6[%c0_26, %c0_27] : memref<64x1xf32, #tpu.memory_space<vmem>>, vector<64x1xf32>
    %83 = vector.broadcast %82 : vector<64x1xf32> to vector<64x128xf32>
    %84 = arith.mulf %81, %83 : vector<64x128xf32>
    %cst_28 = arith.constant dense<0.000000e+00> : vector<128xf32>
    %85 = vector.multi_reduction <add>, %84, %cst_28 [0] : vector<64x128xf32> to vector<128xf32>
    %86 = vector.shape_cast %85 : vector<128xf32> to vector<1x128xf32>
    %c0_29 = arith.constant 0 : index
    %c0_30 = arith.constant 0 : index
    %87 = memref.load %arg7[%c0_29, %c0_30] : memref<1x1xf32, #tpu.memory_space<smem>>
    %88 = vector.broadcast %87 : f32 to vector<1x128xf32>
    %89 = arith.addf %86, %88 : vector<1x128xf32>
    %90 = arith.negf %89 : vector<1x128xf32>
    %91 = math.exp %90 : vector<1x128xf32>
    %cst_31 = arith.constant 1.000000e+00 : f32
    %92 = vector.broadcast %cst_31 : f32 to vector<1x128xf32>
    %93 = arith.addf %92, %91 : vector<1x128xf32>
    %94 = arith.divf %92, %93 : vector<1x128xf32>
    %c0_32 = arith.constant 0 : index
    %c0_33 = arith.constant 0 : index
    %95 = vector.load %arg8[%c0_32, %c0_33] : memref<1x128xf32, #tpu.memory_space<vmem>>, vector<1x128xf32>
    tpu.vector_store %arg8[%c0_32, %c0_33], %94 {strides = array<i32>} : memref<1x128xf32, #tpu.memory_space<vmem>>, vector<1x128xf32>,
    return
  }
  func.func @transform_0(%arg0: i32) -> (i32, i32) {
    %c0_i32 = arith.constant 0 : i32
    %c0_i32_0 = arith.constant 0 : i32
    return %c0_i32, %arg0 : i32, i32
  }
  func.func @transform_1(%arg0: i32) -> (i32, i32) {
    %c0_i32 = arith.constant 0 : i32
    %c0_i32_0 = arith.constant 0 : i32
    %c0_i32_1 = arith.constant 0 : i32
    return %c0_i32, %c0_i32_0 : i32, i32
  }
  func.func @transform_2(%arg0: i32) -> (i32, i32) {
    %c0_i32 = arith.constant 0 : i32
    %c0_i32_0 = arith.constant 0 : i32
    %c0_i32_1 = arith.constant 0 : i32
    return %c0_i32, %c0_i32_0 : i32, i32
  }
  func.func @transform_3(%arg0: i32) -> (i32, i32) {
    %c0_i32 = arith.constant 0 : i32
    %c0_i32_0 = arith.constant 0 : i32
    %c0_i32_1 = arith.constant 0 : i32
    return %c0_i32, %c0_i32_0 : i32, i32
  }
  func.func @transform_4(%arg0: i32) -> (i32, i32) {
    %c0_i32 = arith.constant 0 : i32
    %c0_i32_0 = arith.constant 0 : i32
    %c0_i32_1 = arith.constant 0 : i32
    return %c0_i32, %c0_i32_0 : i32, i32
  }
  func.func @transform_5(%arg0: i32) -> (i32, i32) {
    %c0_i32 = arith.constant 0 : i32
    %c0_i32_0 = arith.constant 0 : i32
    %c0_i32_1 = arith.constant 0 : i32
    return %c0_i32, %c0_i32_0 : i32, i32
  }
  func.func @transform_6(%arg0: i32) -> (i32, i32) {
    %c0_i32 = arith.constant 0 : i32
    %c0_i32_0 = arith.constant 0 : i32
    %c0_i32_1 = arith.constant 0 : i32
    return %c0_i32, %c0_i32_0 : i32, i32
  }
  func.func @transform_7(%arg0: i32) -> (i32, i32) {
    %c0_i32 = arith.constant 0 : i32
    %c0_i32_0 = arith.constant 0 : i32
    return %c0_i32, %arg0 : i32, i32
  }
}

</mosaic_0001>

<llo_original>
// kernel: tpu_custom_call.1
$region0: #{tpu_custom_call.1}
  #allocation0 [shape = 'u32[]', space=smem, size = 0x4, offset = 0x4, fixed_abs, tag = 'smem constant byte address 0x4 - core index']
  #allocation1 [shape = 'u32[144,128]{1,0:T(1,128)}', space=vmem, size = 0x12000, scoped, tag = 'internal scratch']
  #allocation2 [shape = 'f32[1,1]{1,0:T(1,128)S(6)}', space=smem, size = 0x200, scoped, tag = 'scoped memory for tpu_custom_call.1']
  %s0 = inlined_call_operand.vmem [shape: f32[2,8], index: 0, kind: input, shape index: {}]
  %s1 = inlined_call_operand.vmem [shape: f32[64,2], index: 1, kind: input, shape index: {}]
  %s2 = inlined_call_operand.vmem [shape: f32[64,1], index: 2, kind: input, shape index: {}]
  %s3 = inlined_call_operand.vmem [shape: f32[64,1], index: 3, kind: input, shape index: {}]
  %s4 = inlined_call_operand.vmem [shape: f32[64,1], index: 4, kind: input, shape index: {}]
  %s5 = inlined_call_operand.vmem [shape: f32[64,1], index: 5, kind: input, shape index: {}]
  %s6 = inlined_call_operand.<no memory space> [shape: f32[1,1], index: 6, kind: input, shape index: {}]
  %s7 = inlined_call_operand.hbm [shape: f32[1,8], index: 7, kind: output, shape index: {}]
  %s8 = sld [smem:[#allocation0]]
  $region38: #{tpu_custom_call.1} parent=0
    _
  %s10 = ssub.s32 1, %s8
  %s11 = scalar_select 0, %s10, %s8
  %12 = sst [smem:[#allocation2]] %s6
  $region1: #{tpu_custom_call.1} parent=0
    #allocation3 [shape = 'u8[512]{0}', space=vmem, size = 0x400, scoped, tag = 'output window, operand 0, single buffered']
    #allocation4 [shape = 's32[1]{0}', space=sflag, size = 0x4, scoped, tag = 'scoped memory for tpu_custom_call.1']
    %13 = vsyncpa [#allocation4], 0
    // Predicated region
    $region2: #{tpu_custom_call.1} parent=1 // pred_check
      _
    $region3: #{tpu_custom_call.1} parent=1 // pred_check_branch
      %15 = sbr.rel (0) target = $region5
    $region4: #{tpu_custom_call.1} parent=1 // pred_region
      _
    $region5: #{tpu_custom_call.1} parent=1 // pred_fallthru
      _
    // Predicated region
    $region6: #{tpu_custom_call.1} parent=1 // pred_check
      _
    $region7: #{tpu_custom_call.1} parent=1 // pred_check_branch
      %17 = sbr.rel (0) target = $region9
    $region8: #{tpu_custom_call.1} parent=1 // pred_region
      _
    $region9: #{tpu_custom_call.1} parent=1 // pred_fallthru
      _
    // Predicated region
    $region10: #{tpu_custom_call.1} parent=1 // pred_check
      _
    $region11: #{tpu_custom_call.1} parent=1 // pred_check_branch
      %19 = sbr.rel (0) target = $region13
    $region12: #{tpu_custom_call.1} parent=1 // pred_region
      _
    $region13: #{tpu_custom_call.1} parent=1 // pred_fallthru
      _
    // Predicated region
    $region14: #{tpu_custom_call.1} parent=1 // pred_check
      _
    $region15: #{tpu_custom_call.1} parent=1 // pred_check_branch
      %21 = sbr.rel (0) target = $region17
    $region16: #{tpu_custom_call.1} parent=1 // pred_region
      _
    $region17: #{tpu_custom_call.1} parent=1 // pred_fallthru
      _
    // Predicated region
    $region18: #{tpu_custom_call.1} parent=1 // pred_check
      _
    $region19: #{tpu_custom_call.1} parent=1 // pred_check_branch
      %23 = sbr.rel (0) target = $region21
    $region20: #{tpu_custom_call.1} parent=1 // pred_region
      _
    $region21: #{tpu_custom_call.1} parent=1 // pred_fallthru
      _
    // Predicated region
    $region22: #{tpu_custom_call.1} parent=1 // pred_check
      _
    $region23: #{tpu_custom_call.1} parent=1 // pred_check_branch
      %25 = sbr.rel (0) target = $region25
    $region24: #{tpu_custom_call.1} parent=1 // pred_region
      _
    $region25: #{tpu_custom_call.1} parent=1 // pred_fallthru
      _
    // Predicated region
    $region26: #{tpu_custom_call.1} parent=1 // pred_check
      _
    $region27: #{tpu_custom_call.1} parent=1 // pred_check_branch
      %27 = sbr.rel (0) target = $region29
    $region28: #{tpu_custom_call.1} parent=1 // pred_region
      _
    $region29: #{tpu_custom_call.1} parent=1 // pred_fallthru
      _
    %v28 = vld [vmem:[%s0] sm:$0x3]
    %v29 = vld [vmem:[%s1] sm:$0xff]
    %v30 = vld [vmem:[%s1 + $0x8] sm:$0xff]
    %v31 = vld [vmem:[%s1 + $0x10] sm:$0xff]
    %v32 = vld [vmem:[%s1 + $0x18] sm:$0xff]
    %v33 = vld [vmem:[%s1 + $0x20] sm:$0xff]
    %v34 = vld [vmem:[%s1 + $0x28] sm:$0xff]
    %v35 = vld [vmem:[%s1 + $0x30] sm:$0xff]
    %v36 = vld [vmem:[%s1 + $0x38] sm:$0xff]
    %38 = vset.pattern.permute.xlu0 0
    %39 = vperm.xlu0 %38, %v29
    %v40 = vpop.permute.xlu0 %39
    %43 = vset.pattern.permute.xlu0 0
    %44 = vperm.xlu0 %43, %v30
    %v45 = vpop.permute.xlu0 %44
    %48 = vset.pattern.permute.xlu0 0
    %49 = vperm.xlu0 %48, %v31
    %v50 = vpop.permute.xlu0 %49
    %53 = vset.pattern.permute.xlu0 0
    %54 = vperm.xlu0 %53, %v32
    %v55 = vpop.permute.xlu0 %54
    %58 = vset.pattern.permute.xlu0 0
    %59 = vperm.xlu0 %58, %v33
    %v60 = vpop.permute.xlu0 %59
    %63 = vset.pattern.permute.xlu0 0
    %64 = vperm.xlu0 %63, %v34
    %v65 = vpop.permute.xlu0 %64
    %68 = vset.pattern.permute.xlu0 0
    %69 = vperm.xlu0 %68, %v35
    %v70 = vpop.permute.xlu0 %69
    %73 = vset.pattern.permute.xlu0 0
    %74 = vperm.xlu0 %73, %v36
    %v75 = vpop.permute.xlu0 %74
    %v77 = vlaneseq
    %v78 = vshrl.u32 %v77, 7
    %v79 = vsub.s32 0, %v78
    %v80 = vrot.slane %v28, %v79
    %v81 = vmul.f32 %v40, %v80
    %v82 = vmul.f32 %v45, %v80
    %v83 = vmul.f32 %v50, %v80
    %v84 = vmul.f32 %v55, %v80
    %v85 = vmul.f32 %v60, %v80
    %v86 = vmul.f32 %v65, %v80
    %v87 = vmul.f32 %v70, %v80
    %v88 = vmul.f32 %v75, %v80
    %89 = vset.pattern.permute.xlu0 1
    %90 = vperm.xlu0 %89, %v29
    %v91 = vpop.permute.xlu0 %90
    %93 = vset.pattern.permute.xlu0 1
    %94 = vperm.xlu0 %93, %v30
    %v95 = vpop.permute.xlu0 %94
    %97 = vset.pattern.permute.xlu0 1
    %98 = vperm.xlu0 %97, %v31
    %v99 = vpop.permute.xlu0 %98
    %101 = vset.pattern.permute.xlu0 1
    %102 = vperm.xlu0 %101, %v32
    %v103 = vpop.permute.xlu0 %102
    %105 = vset.pattern.permute.xlu0 1
    %106 = vperm.xlu0 %105, %v33
    %v107 = vpop.permute.xlu0 %106
    %109 = vset.pattern.permute.xlu0 1
    %110 = vperm.xlu0 %109, %v34
    %v111 = vpop.permute.xlu0 %110
    %113 = vset.pattern.permute.xlu0 1
    %114 = vperm.xlu0 %113, %v35
    %v115 = vpop.permute.xlu0 %114
    %117 = vset.pattern.permute.xlu0 1
    %118 = vperm.xlu0 %117, %v36
    %v119 = vpop.permute.xlu0 %118
    %v121 = vlaneseq
    %v122 = vshrl.u32 %v121, 7
    %v123 = vsub.s32 1, %v122
    %v124 = vrot.slane %v28, %v123
    %v125 = vmul.f32 %v91, %v124
    %v126 = vmul.f32 %v95, %v124
    %v127 = vmul.f32 %v99, %v124
    %v128 = vmul.f32 %v103, %v124
    %v129 = vmul.f32 %v107, %v124
    %v130 = vmul.f32 %v111, %v124
    %v131 = vmul.f32 %v115, %v124
    %v132 = vmul.f32 %v119, %v124
    %v133 = vadd.f32 %v81, %v125
    %v134 = vadd.f32 %v82, %v126
    %v135 = vadd.f32 %v83, %v127
    %v136 = vadd.f32 %v84, %v128
    %v137 = vadd.f32 %v85, %v129
    %v138 = vadd.f32 %v86, %v130
    %v139 = vadd.f32 %v87, %v131
    %v140 = vadd.f32 %v88, %v132
    %v141 = vld [vmem:[%s2] sm:$0xff]
    %v142 = vld [vmem:[%s2 + $0x8] sm:$0xff]
    %v143 = vld [vmem:[%s2 + $0x10] sm:$0xff]
    %v144 = vld [vmem:[%s2 + $0x18] sm:$0xff]
    %v145 = vld [vmem:[%s2 + $0x20] sm:$0xff]
    %v146 = vld [vmem:[%s2 + $0x28] sm:$0xff]
    %v147 = vld [vmem:[%s2 + $0x30] sm:$0xff]
    %v148 = vld [vmem:[%s2 + $0x38] sm:$0xff]
    %150 = vset.pattern.permute.xlu0 0
    %151 = vperm.xlu0 %150, %v141
    %v152 = vpop.permute.xlu0 %151
    %155 = vset.pattern.permute.xlu0 0
    %156 = vperm.xlu0 %155, %v142
    %v157 = vpop.permute.xlu0 %156
    %160 = vset.pattern.permute.xlu0 0
    %161 = vperm.xlu0 %160, %v143
    %v162 = vpop.permute.xlu0 %161
    %165 = vset.pattern.permute.xlu0 0
    %166 = vperm.xlu0 %165, %v144
    %v167 = vpop.permute.xlu0 %166
    %170 = vset.pattern.permute.xlu0 0
    %171 = vperm.xlu0 %170, %v145
    %v172 = vpop.permute.xlu0 %171
    %175 = vset.pattern.permute.xlu0 0
    %176 = vperm.xlu0 %175, %v146
    %v177 = vpop.permute.xlu0 %176
    %180 = vset.pattern.permute.xlu0 0
    %181 = vperm.xlu0 %180, %v147
    %v182 = vpop.permute.xlu0 %181
    %185 = vset.pattern.permute.xlu0 0
    %186 = vperm.xlu0 %185, %v148
    %v187 = vpop.permute.xlu0 %186
    %v189 = vadd.f32 %v133, %v152
    %v190 = vadd.f32 %v134, %v157
    %v191 = vadd.f32 %v135, %v162
    %v192 = vadd.f32 %v136, %v167
    %v193 = vadd.f32 %v137, %v172
    %v194 = vadd.f32 %v138, %v177
    %v195 = vadd.f32 %v139, %v182
    %v196 = vadd.f32 %v140, %v187
    %v197 = vadd.f32 %v189, %v190
    %v198 = vadd.f32 %v197, %v191
    %v199 = vadd.f32 %v198, %v192
    %v200 = vadd.f32 %v199, %v193
    %v201 = vadd.f32 %v200, %v194
    %v202 = vadd.f32 %v201, %v195
    %v203 = vadd.f32 %v202, %v196
    %v204 = vrot.slane %v203, 4
    %v205 = vadd.f32 %v203, %v204
    %v206 = vrot.slane %v205, 2
    %v207 = vadd.f32 %v205, %v206
    %v208 = vrot.slane %v207, 1
    %v209 = vadd.f32 %v207, %v208
    %v210 = vrcp.pop 64.0
    %v211 = vmul.f32 %v209, %v210
    %v212 = vsub.f32 %v189, %v211
    %v213 = vsub.f32 %v190, %v211
    %v214 = vsub.f32 %v191, %v211
    %v215 = vsub.f32 %v192, %v211
    %v216 = vsub.f32 %v193, %v211
    %v217 = vsub.f32 %v194, %v211
    %v218 = vsub.f32 %v195, %v211
    %v219 = vsub.f32 %v196, %v211
    %v220 = vmul.f32 %v212, %v212
    %v221 = vmul.f32 %v213, %v213
    %v222 = vmul.f32 %v214, %v214
    %v223 = vmul.f32 %v215, %v215
    %v224 = vmul.f32 %v216, %v216
    %v225 = vmul.f32 %v217, %v217
    %v226 = vmul.f32 %v218, %v218
    %v227 = vmul.f32 %v219, %v219
    %v228 = vadd.f32 %v220, %v221
    %v229 = vadd.f32 %v228, %v222
    %v230 = vadd.f32 %v229, %v223
    %v231 = vadd.f32 %v230, %v224
    %v232 = vadd.f32 %v231, %v225
    %v233 = vadd.f32 %v232, %v226
    %v234 = vadd.f32 %v233, %v227
    %v235 = vrot.slane %v234, 4
    %v236 = vadd.f32 %v234, %v235
    %v237 = vrot.slane %v236, 2
    %v238 = vadd.f32 %v236, %v237
    %v239 = vrot.slane %v238, 1
    %v240 = vadd.f32 %v238, %v239
    %v241 = vmul.f32 %v240, %v210
    %v242 = vadd.f32 %v241, 1e-05
    %v243 = vrsqrt.pop %v242
    %v244 = vmul.f32 %v212, %v243
    %v245 = vmul.f32 %v213, %v243
    %v246 = vmul.f32 %v214, %v243
    %v247 = vmul.f32 %v215, %v243
    %v248 = vmul.f32 %v216, %v243
    %v249 = vmul.f32 %v217, %v243
    %v250 = vmul.f32 %v218, %v243
    %v251 = vmul.f32 %v219, %v243
    %v252 = vld [vmem:[%s3] sm:$0xff]
    %v253 = vld [vmem:[%s3 + $0x8] sm:$0xff]
    %v254 = vld [vmem:[%s3 + $0x10] sm:$0xff]
    %v255 = vld [vmem:[%s3 + $0x18] sm:$0xff]
    %v256 = vld [vmem:[%s3 + $0x20] sm:$0xff]
    %v257 = vld [vmem:[%s3 + $0x28] sm:$0xff]
    %v258 = vld [vmem:[%s3 + $0x30] sm:$0xff]
    %v259 = vld [vmem:[%s3 + $0x38] sm:$0xff]
    %261 = vset.pattern.permute.xlu0 0
    %262 = vperm.xlu0 %261, %v252
    %v263 = vpop.permute.xlu0 %262
    %266 = vset.pattern.permute.xlu0 0
    %267 = vperm.xlu0 %266, %v253
    %v268 = vpop.permute.xlu0 %267
    %271 = vset.pattern.permute.xlu0 0
    %272 = vperm.xlu0 %271, %v254
    %v273 = vpop.permute.xlu0 %272
    %276 = vset.pattern.permute.xlu0 0
    %277 = vperm.xlu0 %276, %v255
    %v278 = vpop.permute.xlu0 %277
    %281 = vset.pattern.permute.xlu0 0
    %282 = vperm.xlu0 %281, %v256
    %v283 = vpop.permute.xlu0 %282
    %286 = vset.pattern.permute.xlu0 0
    %287 = vperm.xlu0 %286, %v257
    %v288 = vpop.permute.xlu0 %287
    %291 = vset.pattern.permute.xlu0 0
    %292 = vperm.xlu0 %291, %v258
    %v293 = vpop.permute.xlu0 %292
    %296 = vset.pattern.permute.xlu0 0
    %297 = vperm.xlu0 %296, %v259
    %v298 = vpop.permute.xlu0 %297
    %v300 = vmul.f32 %v244, %v263
    %v301 = vmul.f32 %v245, %v268
    %v302 = vmul.f32 %v246, %v273
    %v303 = vmul.f32 %v247, %v278
    %v304 = vmul.f32 %v248, %v283
    %v305 = vmul.f32 %v249, %v288
    %v306 = vmul.f32 %v250, %v293
    %v307 = vmul.f32 %v251, %v298
    %v308 = vld [vmem:[%s4] sm:$0xff]
    %v309 = vld [vmem:[%s4 + $0x8] sm:$0xff]
    %v310 = vld [vmem:[%s4 + $0x10] sm:$0xff]
    %v311 = vld [vmem:[%s4 + $0x18] sm:$0xff]
    %v312 = vld [vmem:[%s4 + $0x20] sm:$0xff]
    %v313 = vld [vmem:[%s4 + $0x28] sm:$0xff]
    %v314 = vld [vmem:[%s4 + $0x30] sm:$0xff]
    %v315 = vld [vmem:[%s4 + $0x38] sm:$0xff]
    %317 = vset.pattern.permute.xlu0 0
    %318 = vperm.xlu0 %317, %v308
    %v319 = vpop.permute.xlu0 %318
    %322 = vset.pattern.permute.xlu0 0
    %323 = vperm.xlu0 %322, %v309
    %v324 = vpop.permute.xlu0 %323
    %327 = vset.pattern.permute.xlu0 0
    %328 = vperm.xlu0 %327, %v310
    %v329 = vpop.permute.xlu0 %328
    %332 = vset.pattern.permute.xlu0 0
    %333 = vperm.xlu0 %332, %v311
    %v334 = vpop.permute.xlu0 %333
    %337 = vset.pattern.permute.xlu0 0
    %338 = vperm.xlu0 %337, %v312
    %v339 = vpop.permute.xlu0 %338
    %342 = vset.pattern.permute.xlu0 0
    %343 = vperm.xlu0 %342, %v313
    %v344 = vpop.permute.xlu0 %343
    %347 = vset.pattern.permute.xlu0 0
    %348 = vperm.xlu0 %347, %v314
    %v349 = vpop.permute.xlu0 %348
    %352 = vset.pattern.permute.xlu0 0
    %353 = vperm.xlu0 %352, %v315
    %v354 = vpop.permute.xlu0 %353
    %v356 = vadd.f32 %v300, %v319
    %v357 = vadd.f32 %v301, %v324
    %v358 = vadd.f32 %v302, %v329
    %v359 = vadd.f32 %v303, %v334
    %v360 = vadd.f32 %v304, %v339
    %v361 = vadd.f32 %v305, %v344
    %v362 = vadd.f32 %v306, %v349
    %v363 = vadd.f32 %v307, %v354
    %v364 = vmul.f32 %v356, 0.5
    %v365 = vmul.f32 %v357, 0.5
    %v366 = vmul.f32 %v358, 0.5
    %v367 = vmul.f32 %v359, 0.5
    %v368 = vmul.f32 %v360, 0.5
    %v369 = vmul.f32 %v361, 0.5
    %v370 = vmul.f32 %v362, 0.5
    %v371 = vmul.f32 %v363, 0.5
    %v372 = vmul.f32 %v356, 0.70710677
    %v373 = vmul.f32 %v357, 0.70710677
    %v374 = vmul.f32 %v358, 0.70710677
    %v375 = vmul.f32 %v359, 0.70710677
    %v376 = vmul.f32 %v360, 0.70710677
    %v377 = vmul.f32 %v361, 0.70710677
    %v378 = vmul.f32 %v362, 0.70710677
    %v379 = vmul.f32 %v363, 0.70710677
    %v380 = vand.u32 2147483647, %v372
    %v381 = vand.u32 2147483647, %v373
    %v382 = vand.u32 2147483647, %v374
    %v383 = vand.u32 2147483647, %v375
    %v384 = vand.u32 2147483647, %v376
    %v385 = vand.u32 2147483647, %v377
    %v386 = vand.u32 2147483647, %v378
    %v387 = vand.u32 2147483647, %v379
    %v388 = vmul.f32 %v380, 0.3275911
    %v389 = vmul.f32 %v381, 0.3275911
    %v390 = vmul.f32 %v382, 0.3275911
    %v391 = vmul.f32 %v383, 0.3275911
    %v392 = vmul.f32 %v384, 0.3275911
    %v393 = vmul.f32 %v385, 0.3275911
    %v394 = vmul.f32 %v386, 0.3275911
    %v395 = vmul.f32 %v387, 0.3275911
    %v396 = vadd.f32 %v388, 1.0
    %v397 = vadd.f32 %v389, 1.0
    %v398 = vadd.f32 %v390, 1.0
    %v399 = vadd.f32 %v391, 1.0
    %v400 = vadd.f32 %v392, 1.0
    %v401 = vadd.f32 %v393, 1.0
    %v402 = vadd.f32 %v394, 1.0
    %v403 = vadd.f32 %v395, 1.0
    %v404 = vrcp.pop %v396
    %v405 = vrcp.pop %v397
    %v406 = vrcp.pop %v398
    %v407 = vrcp.pop %v399
    %v408 = vrcp.pop %v400
    %v409 = vrcp.pop %v401
    %v410 = vrcp.pop %v402
    %v411 = vrcp.pop %v403
    %v412 = vmul.f32 %v396, %v404
    %v413 = vmul.f32 %v397, %v405
    %v414 = vmul.f32 %v398, %v406
    %v415 = vmul.f32 %v399, %v407
    %v416 = vmul.f32 %v400, %v408
    %v417 = vmul.f32 %v401, %v409
    %v418 = vmul.f32 %v402, %v410
    %v419 = vmul.f32 %v403, %v411
    %v420 = vsub.f32 2.0, %v412
    %v421 = vsub.f32 2.0, %v413
    %v422 = vsub.f32 2.0, %v414
    %v423 = vsub.f32 2.0, %v415
    %v424 = vsub.f32 2.0, %v416
    %v425 = vsub.f32 2.0, %v417
    %v426 = vsub.f32 2.0, %v418
    %v427 = vsub.f32 2.0, %v419
    %v428 = vmul.f32 %v404, %v420
    %v429 = vmul.f32 %v405, %v421
    %v430 = vmul.f32 %v406, %v422
    %v431 = vmul.f32 %v407, %v423
    %v432 = vmul.f32 %v408, %v424
    %v433 = vmul.f32 %v409, %v425
    %v434 = vmul.f32 %v410, %v426
    %v435 = vmul.f32 %v411, %v427
    %v436 = vmul.f32 %v428, 1.0614054
    %v437 = vmul.f32 %v429, 1.0614054
    %v438 = vmul.f32 %v430, 1.0614054
    %v439 = vmul.f32 %v431, 1.0614054
    %v440 = vmul.f32 %v432, 1.0614054
    %v441 = vmul.f32 %v433, 1.0614054
    %v442 = vmul.f32 %v434, 1.0614054
    %v443 = vmul.f32 %v435, 1.0614054
    %v444 = vadd.f32 %v436, -1.4531521
    %v445 = vadd.f32 %v437, -1.4531521
    %v446 = vadd.f32 %v438, -1.4531521
    %v447 = vadd.f32 %v439, -1.4531521
    %v448 = vadd.f32 %v440, -1.4531521
    %v449 = vadd.f32 %v441, -1.4531521
    %v450 = vadd.f32 %v442, -1.4531521
    %v451 = vadd.f32 %v443, -1.4531521
    %v452 = vmul.f32 %v444, %v428
    %v453 = vmul.f32 %v445, %v429
    %v454 = vmul.f32 %v446, %v430
    %v455 = vmul.f32 %v447, %v431
    %v456 = vmul.f32 %v448, %v432
    %v457 = vmul.f32 %v449, %v433
    %v458 = vmul.f32 %v450, %v434
    %v459 = vmul.f32 %v451, %v435
    %v460 = vadd.f32 %v452, 1.4214138
    %v461 = vadd.f32 %v453, 1.4214138
    %v462 = vadd.f32 %v454, 1.4214138
    %v463 = vadd.f32 %v455, 1.4214138
    %v464 = vadd.f32 %v456, 1.4214138
    %v465 = vadd.f32 %v457, 1.4214138
    %v466 = vadd.f32 %v458, 1.4214138
    %v467 = vadd.f32 %v459, 1.4214138
    %v468 = vmul.f32 %v460, %v428
    %v469 = vmul.f32 %v461, %v429
    %v470 = vmul.f32 %v462, %v430
    %v471 = vmul.f32 %v463, %v431
    %v472 = vmul.f32 %v464, %v432
    %v473 = vmul.f32 %v465, %v433
    %v474 = vmul.f32 %v466, %v434
    %v475 = vmul.f32 %v467, %v435
    %v476 = vadd.f32 %v468, -0.28449672
    %v477 = vadd.f32 %v469, -0.28449672
    %v478 = vadd.f32 %v470, -0.28449672
    %v479 = vadd.f32 %v471, -0.28449672
    %v480 = vadd.f32 %v472, -0.28449672
    %v481 = vadd.f32 %v473, -0.28449672
    %v482 = vadd.f32 %v474, -0.28449672
    %v483 = vadd.f32 %v475, -0.28449672
    %v484 = vmul.f32 %v476, %v428
    %v485 = vmul.f32 %v477, %v429
    %v486 = vmul.f32 %v478, %v430
    %v487 = vmul.f32 %v479, %v431
    %v488 = vmul.f32 %v480, %v432
    %v489 = vmul.f32 %v481, %v433
    %v490 = vmul.f32 %v482, %v434
    %v491 = vmul.f32 %v483, %v435
    %v492 = vadd.f32 %v484, 0.2548296
    %v493 = vadd.f32 %v485, 0.2548296
    %v494 = vadd.f32 %v486, 0.2548296
    %v495 = vadd.f32 %v487, 0.2548296
    %v496 = vadd.f32 %v488, 0.2548296
    %v497 = vadd.f32 %v489, 0.2548296
    %v498 = vadd.f32 %v490, 0.2548296
    %v499 = vadd.f32 %v491, 0.2548296
    %v500 = vmul.f32 %v492, %v428
    %v501 = vmul.f32 %v493, %v429
    %v502 = vmul.f32 %v494, %v430
    %v503 = vmul.f32 %v495, %v431
    %v504 = vmul.f32 %v496, %v432
    %v505 = vmul.f32 %v497, %v433
    %v506 = vmul.f32 %v498, %v434
    %v507 = vmul.f32 %v499, %v435
    %v508 = vsub.f32 0.0, %v380
    %v509 = vsub.f32 0.0, %v381
    %v510 = vsub.f32 0.0, %v382
    %v511 = vsub.f32 0.0, %v383
    %v512 = vsub.f32 0.0, %v384
    %v513 = vsub.f32 0.0, %v385
    %v514 = vsub.f32 0.0, %v386
    %v515 = vsub.f32 0.0, %v387
    %v516 = vmul.f32 %v508, %v380
    %v517 = vmul.f32 %v509, %v381
    %v518 = vmul.f32 %v510, %v382
    %v519 = vmul.f32 %v511, %v383
    %v520 = vmul.f32 %v512, %v384
    %v521 = vmul.f32 %v513, %v385
    %v522 = vmul.f32 %v514, %v386
    %v523 = vmul.f32 %v515, %v387
    %v524 = vmul.f32 %v516, 1.442695
    %v525 = vpow.pop %v524
    %v526 = vmul.f32 %v517, 1.442695
    %v527 = vpow.pop %v526
    %v528 = vmul.f32 %v518, 1.442695
    %v529 = vpow.pop %v528
    %v530 = vmul.f32 %v519, 1.442695
    %v531 = vpow.pop %v530
    %v532 = vmul.f32 %v520, 1.442695
    %v533 = vpow.pop %v532
    %v534 = vmul.f32 %v521, 1.442695
    %v535 = vpow.pop %v534
    %v536 = vmul.f32 %v522, 1.442695
    %v537 = vpow.pop %v536
    %v538 = vmul.f32 %v523, 1.442695
    %v539 = vpow.pop %v538
    %v540 = vmul.f32 %v500, %v525
    %v541 = vmul.f32 %v501, %v527
    %v542 = vmul.f32 %v502, %v529
    %v543 = vmul.f32 %v503, %v531
    %v544 = vmul.f32 %v504, %v533
    %v545 = vmul.f32 %v505, %v535
    %v546 = vmul.f32 %v506, %v537
    %v547 = vmul.f32 %v507, %v539
    %v548 = vsub.f32 1.0, %v540
    %v549 = vsub.f32 1.0, %v541
    %v550 = vsub.f32 1.0, %v542
    %v551 = vsub.f32 1.0, %v543
    %v552 = vsub.f32 1.0, %v544
    %v553 = vsub.f32 1.0, %v545
    %v554 = vsub.f32 1.0, %v546
    %v555 = vsub.f32 1.0, %v547
    %v564 = vand.u32 %v372, 2147483648
    %v565 = vand.u32 %v373, 2147483648
    %v566 = vand.u32 %v374, 2147483648
    %v567 = vand.u32 %v375, 2147483648
    %v568 = vand.u32 %v376, 2147483648
    %v569 = vand.u32 %v377, 2147483648
    %v570 = vand.u32 %v378, 2147483648
    %v571 = vand.u32 %v379, 2147483648
    %v580 = vxor.u32 %v548, %v564
    %v581 = vxor.u32 %v549, %v565
    %v582 = vxor.u32 %v550, %v566
    %v583 = vxor.u32 %v551, %v567
    %v584 = vxor.u32 %v552, %v568
    %v585 = vxor.u32 %v553, %v569
    %v586 = vxor.u32 %v554, %v570
    %v587 = vxor.u32 %v555, %v571
    %v596 = vadd.f32 %v580, 1.0
    %v597 = vadd.f32 %v581, 1.0
    %v598 = vadd.f32 %v582, 1.0
    %v599 = vadd.f32 %v583, 1.0
    %v600 = vadd.f32 %v584, 1.0
    %v601 = vadd.f32 %v585, 1.0
    %v602 = vadd.f32 %v586, 1.0
    %v603 = vadd.f32 %v587, 1.0
    %v604 = vmul.f32 %v364, %v596
    %v605 = vmul.f32 %v365, %v597
    %v606 = vmul.f32 %v366, %v598
    %v607 = vmul.f32 %v367, %v599
    %v608 = vmul.f32 %v368, %v600
    %v609 = vmul.f32 %v369, %v601
    %v610 = vmul.f32 %v370, %v602
    %v611 = vmul.f32 %v371, %v603
    %v612 = vld [vmem:[%s5] sm:$0xff]
    %v613 = vld [vmem:[%s5 + $0x8] sm:$0xff]
    %v614 = vld [vmem:[%s5 + $0x10] sm:$0xff]
    %v615 = vld [vmem:[%s5 + $0x18] sm:$0xff]
    %v616 = vld [vmem:[%s5 + $0x20] sm:$0xff]
    %v617 = vld [vmem:[%s5 + $0x28] sm:$0xff]
    %v618 = vld [vmem:[%s5 + $0x30] sm:$0xff]
    %v619 = vld [vmem:[%s5 + $0x38] sm:$0xff]
    %621 = vset.pattern.permute.xlu0 0
    %622 = vperm.xlu0 %621, %v612
    %v623 = vpop.permute.xlu0 %622
    %626 = vset.pattern.permute.xlu0 0
    %627 = vperm.xlu0 %626, %v613
    %v628 = vpop.permute.xlu0 %627
    %631 = vset.pattern.permute.xlu0 0
    %632 = vperm.xlu0 %631, %v614
    %v633 = vpop.permute.xlu0 %632
    %636 = vset.pattern.permute.xlu0 0
    %637 = vperm.xlu0 %636, %v615
    %v638 = vpop.permute.xlu0 %637
    %641 = vset.pattern.permute.xlu0 0
    %642 = vperm.xlu0 %641, %v616
    %v643 = vpop.permute.xlu0 %642
    %646 = vset.pattern.permute.xlu0 0
    %647 = vperm.xlu0 %646, %v617
    %v648 = vpop.permute.xlu0 %647
    %651 = vset.pattern.permute.xlu0 0
    %652 = vperm.xlu0 %651, %v618
    %v653 = vpop.permute.xlu0 %652
    %656 = vset.pattern.permute.xlu0 0
    %657 = vperm.xlu0 %656, %v619
    %v658 = vpop.permute.xlu0 %657
    %v660 = vmul.f32 %v604, %v623
    %v661 = vmul.f32 %v605, %v628
    %v662 = vmul.f32 %v606, %v633
    %v663 = vmul.f32 %v607, %v638
    %v664 = vmul.f32 %v608, %v643
    %v665 = vmul.f32 %v609, %v648
    %v666 = vmul.f32 %v610, %v653
    %v667 = vmul.f32 %v611, %v658
    %v668 = vadd.f32 %v660, %v661
    %v669 = vadd.f32 %v668, %v662
    %v670 = vadd.f32 %v669, %v663
    %v671 = vadd.f32 %v670, %v664
    %v672 = vadd.f32 %v671, %v665
    %v673 = vadd.f32 %v672, %v666
    %v674 = vadd.f32 %v673, %v667
    %v675 = vrot.slane %v674, 4
    %v676 = vadd.f32 %v674, %v675
    %v677 = vrot.slane %v676, 2
    %v678 = vadd.f32 %v676, %v677
    %v679 = vrot.slane %v678, 1
    %v680 = vadd.f32 %v678, %v679
    %s681 = sld [smem:[#allocation2]]
    %v682 = vstv %s681
    %v683 = vadd.f32 %v680, %v682
    %v684 = vxor.u32 %v683, 2147483648
    %v685 = vmul.f32 %v684, 1.442695
    %v686 = vpow.pop %v685
    %v687 = vadd.f32 %v686, 1.0
    %v688 = vrcp.pop %v687
    %v689 = vmul.f32 1.0, %v688
    %690 = vst [vmem:[#allocation3] sm:$0x1] %v689
    // Predicated region
    $region30: #{tpu_custom_call.1} parent=1 // pred_check
      _
    $region31: #{tpu_custom_call.1} parent=1 // pred_check_branch
      %692 = sbr.rel (0) target = $region33
    $region32: #{tpu_custom_call.1} parent=1 // pred_region
      %s694 = ssub.s32 16, 16
      %695 = vsyncadd [#allocation4], %s694
      %s697 = sshll.u32 [#allocation3], 4
      %s698 = int_to_ptr.vmem [resolvable:$true] %s697
      %700 = dma.vmem_to_hbm [thread:$0]  %s698, 16, %s7, [#allocation4]
    $region33: #{tpu_custom_call.1} parent=1 // pred_fallthru
      _
    // Predicated region
    $region34: #{tpu_custom_call.1} parent=1 // pred_check
      _
    $region35: #{tpu_custom_call.1} parent=1 // pred_check_branch
      %702 = sbr.rel (0) target = $region37
    $region36: #{tpu_custom_call.1} parent=1 // pred_region
      %703 = dma.done [#allocation4], 16
    $region37: #{tpu_custom_call.1} parent=1 // pred_fallthru
      _
    %704 = vsyncpa [#allocation4], 1

</llo_original>
